<compile_context>
chip_gen: v7x
topology: tpu7x:2x2x1
jax: 0.10.0
libtpu: 0.0.40
codegen_flags: <defaults>
</compile_context>

<pallas_src>
import functools

import jax
import jax.numpy as jnp
import numpy as np
from jax.experimental import pallas as pl
from jax.experimental.pallas import tpu as pltpu


def _gmvn_kernel(x_ref, m_ref, s_ref, o_ref):
    # x_ref: (TR, L) tile; m_ref/s_ref: (1, L) f32 vectors (constant index_map,
    # resident across grid steps).  Arithmetic in f32, cast only the output.
    x = x_ref[...].astype(jnp.float32)
    o_ref[...] = ((x - m_ref[...]) * s_ref[...]).astype(o_ref.dtype)


@functools.partial(jax.jit, static_argnames=("tile_rows",))
def global_mean_variance_normalize(x, mean, std, *, tile_rows=2048):
    """(x - mean) / std with mean/std broadcast over all but the last axis."""
    orig_shape = x.shape
    F = orig_shape[-1]
    R = 1
    for d in orig_shape[:-1]:
        R *= d

    mean_f32 = jnp.asarray(mean, jnp.float32).reshape(-1)
    inv_std_f32 = 1.0 / jnp.asarray(std, jnp.float32).reshape(-1)

    # Lane-dense packing: fold `128 // F` rows into the 128-lane axis when exact.
    if F < 128 and 128 % F == 0 and (R * F) % 128 == 0:
        fold = 128 // F
        L = 128
        x2 = x.reshape(R // fold, 128)
        m2 = jnp.tile(mean_f32, fold).reshape(1, 128)
        s2 = jnp.tile(inv_std_f32, fold).reshape(1, 128)
    else:
        # Fallback: keep (R, F) layout; full-F blocks satisfy the lane constraint.
        L = F
        x2 = x.reshape(R, F)
        m2 = mean_f32.reshape(1, F)
        s2 = inv_std_f32.reshape(1, F)

    R2 = x2.shape[0]
    # Row tile: 2048 rows x 128 lanes x f32 = 1 MiB/tile -> ~4 MiB pipelined
    # (2 in + 2 out buffers), safely under v5e's 16 MiB scoped-VMEM default and
    # v7x's 32 MiB default.  Small inputs take the whole array as one block
    # (block dim == full extent, so the (8,128) divisibility rule is satisfied).
    TR = tile_rows if R2 > tile_rows else R2
    grid = (pl.cdiv(R2, TR),)

    out = pl.pallas_call(
        _gmvn_kernel,
        out_shape=jax.ShapeDtypeStruct((R2, L), x.dtype),
        grid=grid,
        in_specs=[
            pl.BlockSpec((TR, L), lambda i: (i, 0)),
            pl.BlockSpec((1, L), lambda i: (0, 0)),
            pl.BlockSpec((1, L), lambda i: (0, 0)),
        ],
        out_specs=pl.BlockSpec((TR, L), lambda i: (i, 0)),
        compiler_params=pltpu.CompilerParams(
            # Row axis is fully independent -> shard across TCs (2x on v7x).
            dimension_semantics=("parallel",),
        ),
    )(x2, m2, s2)
    return out.reshape(orig_shape)


if __name__ == "__main__":
    key = jax.random.PRNGKey(0)
    kx, km, ks = jax.random.split(key, 3)

    B, T, F = 2, 8, 32
    x = jax.random.normal(kx, (B, T, F), dtype=jnp.float32) * 3.0 + 1.5
    # Deterministic "buffer" parameters (stand-ins for the numpy mean/std arrays).
    mean = jax.random.normal(km, (F,), dtype=jnp.float32)
    std = jax.nn.softplus(jax.random.normal(ks, (F,), dtype=jnp.float32)) + 0.5

    out = global_mean_variance_normalize(x, mean, std)
    out = jax.block_until_ready(out)

    # Reference check against plain JAX (same trailing-dim broadcasting as PyTorch).
    ref = (x - mean) / std
    np.testing.assert_allclose(np.asarray(out), np.asarray(ref), rtol=1e-6, atol=1e-6)

    print("KERNEL_OK")
</pallas_src>

<mosaic_0001>
module attributes {stable_mosaic.version = 11 : i64} {
  func.func @_gmvn_kernel(%arg0: i32, %arg1: memref<4x128xf32, #tpu.memory_space<vmem>>, %arg2: memref<1x128xf32, #tpu.memory_space<vmem>>, %arg3: memref<1x128xf32, #tpu.memory_space<vmem>>, %arg4: memref<4x128xf32, #tpu.memory_space<vmem>>) attributes {dimension_semantics = [#tpu.dimension_semantics<parallel>], iteration_bounds = array<i64: 1>, scalar_prefetch = 0 : i64, scratch_operands = 0 : i64, tpu.core_type = #tpu.core_type<tc>, window_params = [{transform_indices = @transform_0, window_bounds = array<i64: 4, 128>}, {pipeline_mode = #tpu.pipeline_mode<synchronous>, transform_indices = @transform_1, window_bounds = array<i64: 1, 128>}, {pipeline_mode = #tpu.pipeline_mode<synchronous>, transform_indices = @transform_2, window_bounds = array<i64: 1, 128>}, {transform_indices = @transform_3, window_bounds = array<i64: 4, 128>}]} {
    %c0 = arith.constant 0 : index
    %c0_0 = arith.constant 0 : index
    %0 = vector.load %arg1[%c0, %c0_0] : memref<4x128xf32, #tpu.memory_space<vmem>>, vector<4x128xf32>
    %c0_1 = arith.constant 0 : index
    %c0_2 = arith.constant 0 : index
    %1 = vector.load %arg2[%c0_1, %c0_2] : memref<1x128xf32, #tpu.memory_space<vmem>>, vector<1x128xf32>
    %2 = vector.broadcast %1 : vector<1x128xf32> to vector<4x128xf32>
    %3 = arith.subf %0, %2 : vector<4x128xf32>
    %c0_3 = arith.constant 0 : index
    %c0_4 = arith.constant 0 : index
    %4 = vector.load %arg3[%c0_3, %c0_4] : memref<1x128xf32, #tpu.memory_space<vmem>>, vector<1x128xf32>
    %5 = vector.broadcast %4 : vector<1x128xf32> to vector<4x128xf32>
    %6 = arith.mulf %3, %5 : vector<4x128xf32>
    %c0_5 = arith.constant 0 : index
    %c0_6 = arith.constant 0 : index
    %7 = vector.load %arg4[%c0_5, %c0_6] : memref<4x128xf32, #tpu.memory_space<vmem>>, vector<4x128xf32>
    tpu.vector_store %arg4[%c0_5, %c0_6], %6 {strides = array<i32>} : memref<4x128xf32, #tpu.memory_space<vmem>>, vector<4x128xf32>,
    return
  }
  func.func @transform_0(%arg0: i32) -> (i32, i32) {
    %c0_i32 = arith.constant 0 : i32
    %c0_i32_0 = arith.constant 0 : i32
    return %arg0, %c0_i32 : i32, i32
  }
  func.func @transform_1(%arg0: i32) -> (i32, i32) {
    %c0_i32 = arith.constant 0 : i32
    %c0_i32_0 = arith.constant 0 : i32
    %c0_i32_1 = arith.constant 0 : i32
    return %c0_i32, %c0_i32_0 : i32, i32
  }
  func.func @transform_2(%arg0: i32) -> (i32, i32) {
    %c0_i32 = arith.constant 0 : i32
    %c0_i32_0 = arith.constant 0 : i32
    %c0_i32_1 = arith.constant 0 : i32
    return %c0_i32, %c0_i32_0 : i32, i32
  }
  func.func @transform_3(%arg0: i32) -> (i32, i32) {
    %c0_i32 = arith.constant 0 : i32
    %c0_i32_0 = arith.constant 0 : i32
    return %arg0, %c0_i32 : i32, i32
  }
}

</mosaic_0001>

<llo_original>
// kernel: tile.18
$region0: #{tile.18}
  #allocation0 [shape = 's32[1]{0}', space=sflag, size = 0x4, scoped, tag = 'scoped memory for tile.18']
  %s0 = inlined_call_operand.vmem [shape: f32[32], index: 0, kind: input, shape index: {}]
  %s1 = inlined_call_operand.vmem [shape: f32[4,32], index: 1, kind: output, shape index: {}]
  // Predicated region
  $region2: #{tile.18} parent=0 // pred_check
    _
  $region3: #{tile.18} parent=0 // pred_check_branch
    %3 = sbr.rel (0) target = $region5
  $region4: #{tile.18} parent=0 // pred_region
    _
  $region5: #{tile.18} parent=0 // pred_fallthru
    _
  %v4 = vld [vmem:[%s0] ss:$0 sm:$0xff]
  %5 = vst [vmem:[%s1] sm:$0xf] %v4

// kernel: tile.19
$region0: #{tile.19}
  %s0 = inlined_call_operand.vmem [shape: f32[4,32], index: 0, kind: input, shape index: {}]
  %s1 = inlined_call_operand.vmem [shape: f32[1,128], index: 1, kind: output, shape index: {}]
  $region1: #{tile.19} parent=0
    #allocation0 [shape = 'u8[4096]{0}', space=vmem, size = 0x1000, scoped, tag = 'scoped mem for output reshape']
    #allocation1 [shape = 'u8[4096]{0}', space=vmem, size = 0x1000, scoped, tag = 'scoped mem for input reshape']
    %s3 = sshllo.u32 0, 4
    %v4 = vld [vmem:[%s0] sm:%s3]
    %5 = vst [vmem:[#allocation1] sm:%s3] %v4
    %v6 = vld [vmem:[#allocation1] sm:$0x1]
    %vm7 = vcmask 261120
    %8 = vst.msk [vmem:[#allocation0] sm:$0x1] %vm7, %v6
    %s9 = scalar_lea.vmem [#allocation1], 3
    %v10 = vld [vmem:[%s9] sm:$0x1]
    %11 = vrot.lane.b32.xlu0 %v10, 96
    %v12 = vpop.permute.xlu0 %11
    %vm13 = vcmask 1048320
    %14 = vst.msk [vmem:[#allocation0] sm:$0x1] %vm13, %v12
    %s15 = scalar_lea.vmem [#allocation1], 2
    %v16 = vld [vmem:[%s15] sm:$0x1]
    %17 = vrot.lane.b32.xlu0 %v16, 64
    %v18 = vpop.permute.xlu0 %17
    %vm19 = vcmask 785920
    %20 = vst.msk [vmem:[#allocation0] sm:$0x1] %vm19, %v18
    %s21 = scalar_lea.vmem [#allocation1], 1
    %v22 = vld [vmem:[%s21] sm:$0x1]
    %23 = vrot.lane.b32.xlu0 %v22, 32
    %v24 = vpop.permute.xlu0 %23
    %vm25 = vcmask 523520
    %26 = vst.msk [vmem:[#allocation0] sm:$0x1] %vm25, %v24
    %s28 = sshllo.u32 0, 1
    %v30 = vld [vmem:[#allocation0] sm:%s28]
    %s31 = sshllo.u32 0, 1
    %32 = vst [vmem:[%s1] sm:%s31] %v30

// kernel: global_mean_variance_normalize.1
$region0: #{global_mean_variance_normalize.1}
  #allocation0 [shape = 'u32[]', space=smem, size = 0x4, offset = 0x4, fixed_abs, tag = 'smem constant byte address 0x4 - core index']
  #allocation1 [shape = 'u32[144,128]{1,0:T(1,128)}', space=vmem, size = 0x12000, scoped, tag = 'internal scratch']
  %s0 = inlined_call_operand.vmem [shape: f32[4,128], index: 0, kind: input, shape index: {}]
  %s1 = inlined_call_operand.vmem [shape: f32[1,128], index: 1, kind: input, shape index: {}]
  %s2 = inlined_call_operand.vmem [shape: f32[1,128], index: 2, kind: input, shape index: {}]
  %s3 = inlined_call_operand.vmem [shape: f32[4,128], index: 3, kind: output, shape index: {}]
  %s4 = sld [smem:[#allocation0]]
  $region22: #{global_mean_variance_normalize.1} parent=0
    _
  %s6 = ssub.s32 1, %s4
  %s7 = scalar_select 0, %s6, %s4
  // Predicated region
  $region2: #{global_mean_variance_normalize.1} parent=0 // pred_check
    _
  $region3: #{global_mean_variance_normalize.1} parent=0 // pred_check_branch
    %9 = sbr.rel (0) target = $region5
  $region4: #{global_mean_variance_normalize.1} parent=0 // pred_region
    _
  $region5: #{global_mean_variance_normalize.1} parent=0 // pred_fallthru
    _
  // Predicated region
  $region6: #{global_mean_variance_normalize.1} parent=0 // pred_check
    _
  $region7: #{global_mean_variance_normalize.1} parent=0 // pred_check_branch
    %11 = sbr.rel (0) target = $region9
  $region8: #{global_mean_variance_normalize.1} parent=0 // pred_region
    _
  $region9: #{global_mean_variance_normalize.1} parent=0 // pred_fallthru
    _
  // Predicated region
  $region10: #{global_mean_variance_normalize.1} parent=0 // pred_check
    _
  $region11: #{global_mean_variance_normalize.1} parent=0 // pred_check_branch
    %13 = sbr.rel (0) target = $region13
  $region12: #{global_mean_variance_normalize.1} parent=0 // pred_region
    _
  $region13: #{global_mean_variance_normalize.1} parent=0 // pred_fallthru
    _
  %v14 = vld [vmem:[%s0] sm:$0xf]
  %v15 = vld [vmem:[%s1] sm:$0x1]
  %v17 = vlaneseq
  %v18 = vshrl.u32 %v17, 7
  %v19 = vsub.s32 0, %v18
  %v20 = vrot.slane %v15, %v19
  %v22 = vsub.f32 %v14, %v20
  %v23 = vld [vmem:[%s2] sm:$0x1]
  %v25 = vlaneseq
  %v26 = vshrl.u32 %v25, 7
  %v27 = vsub.s32 0, %v26
  %v28 = vrot.slane %v23, %v27
  %v30 = vmul.f32 %v22, %v28
  %31 = vst [vmem:[%s3] sm:$0xf] %v30
  // Predicated region
  $region14: #{global_mean_variance_normalize.1} parent=0 // pred_check
    _
  $region15: #{global_mean_variance_normalize.1} parent=0 // pred_check_branch
    %33 = sbr.rel (0) target = $region17
  $region16: #{global_mean_variance_normalize.1} parent=0 // pred_region
    _
  $region17: #{global_mean_variance_normalize.1} parent=0 // pred_fallthru
    _
  // Predicated region
  $region18: #{global_mean_variance_normalize.1} parent=0 // pred_check
    _
  $region19: #{global_mean_variance_normalize.1} parent=0 // pred_check_branch
    %35 = sbr.rel (0) target = $region21
  $region20: #{global_mean_variance_normalize.1} parent=0 // pred_region
    _
  $region21: #{global_mean_variance_normalize.1} parent=0 // pred_fallthru
    _

</llo_original>
